<compile_context>
chip_gen: v7x
topology: tpu7x:2x2x1
jax: 0.10.0
libtpu: 0.0.40
codegen_flags: <defaults>
</compile_context>

<pallas_src>
import functools

import jax
import jax.numpy as jnp
from jax import lax
from jax.experimental import pallas as pl
from jax.experimental.pallas import tpu as pltpu

LANE = 128   # lane width
SUB = 8      # f32 sublane width


def _device_kind():
    try:
        return jax.devices()[0].device_kind.lower()
    except Exception:
        return ""


def _pick_max_tile_m():
    # v5e: 16 MiB default scoped VMEM -> keep the double-buffered input at 2x2 MiB.
    # v6e / v7x (32 MiB scoped default): 2x4 MiB blocks.
    kind = _device_kind()
    if "v5 lite" in kind or "v5e" in kind or "v5lite" in kind:
        return 4096
    return 8192


def _pick_num_cores():
    # Megacore chips (v4 / v5p / v7x) have 2 TensorCores per device; a leading
    # "parallel" grid axis of that size lets the runtime shard the reduction.
    kind = _device_kind()
    if any(tag in kind for tag in ("v4", "v5p", "7x", "v7")):
        return 2
    return 1


def _softplus_partial_sum_kernel(x_ref, out_ref, *, rows, tile_m, chunk,
                                 blocks_per_core):
    """Accumulate per-(sublane, lane) partial sums of softplus(-x) into (8, 128)."""
    j = pl.program_id(1)

    @pl.when(j == 0)
    def _():
        out_ref[...] = jnp.zeros_like(out_ref)

    # Global row-block index handled by this (core, step).  Clamped duplicate
    # blocks (when total_blocks doesn't split evenly across cores) get
    # rows_valid <= 0 and skip all work below.
    b = pl.program_id(0) * blocks_per_core + j
    rows_valid = rows - b * tile_m          # scalar; may be <= 0 or > tile_m

    def chunk_body(c, carry):
        valid_here = rows_valid - c * chunk

        @pl.when(valid_here > 0)
        def _():
            start = pl.multiple_of(c * chunk, chunk)
            x = x_ref[pl.ds(start, chunk), :].astype(jnp.float32)
            z = -x
            # Numerically stable softplus(z) = max(z, 0) + log1p(exp(-|z|)).
            # Exactly 2 transcendentals / element (EUP-minimal exact softplus).
            sp = jnp.maximum(z, 0.0) + jnp.log1p(jnp.exp(-jnp.abs(z)))

            @pl.when(valid_here >= chunk)
            def _():
                # Fast path (all interior chunks): no mask, pure VPU fold into the
                # (8, 128) accumulator — layout-preserving reshape, no XLU.
                out_ref[...] += jnp.sum(sp.reshape(chunk // SUB, SUB, LANE), axis=0)

            @pl.when(valid_here < chunk)
            def _():
                # Boundary chunk only (at most one real one per call): mask whole
                # rows past the valid range with a single row-iota compare so any
                # garbage (NaN/Inf) in the partially-DMA'd block cannot leak in.
                row = lax.broadcasted_iota(jnp.int32, (chunk, LANE), 0)
                spm = jnp.where(row < valid_here, sp, 0.0)
                out_ref[...] += jnp.sum(spm.reshape(chunk // SUB, SUB, LANE), axis=0)

        return carry

    lax.fori_loop(0, tile_m // chunk, chunk_body, 0)


@jax.jit
def generator_loss(discr_fake_pred):
    """JAX/Pallas equivalent of GeneratorLoss.forward (forward pass only)."""
    # TODO(synk): pallas_call has no autodiff rule; wrap in jax.custom_vjp with
    # d/dx softplus(-x) = -sigmoid(-x) / N if gradients through this loss are needed.
    x = discr_fake_pred.reshape(-1)
    n = x.shape[0]

    itemsize = jnp.dtype(x.dtype).itemsize
    packing = max(1, 4 // itemsize)      # 1 for f32, 2 for bf16/f16
    sub = SUB * packing                  # native sublane tile for this dtype
    granule = sub * LANE

    # Ragged tail: pad (only if needed) up to the (sub, 128) granule with the
    # dtype's max finite value — softplus(-max) == 0 exactly in f32, so padded
    # elements contribute nothing and need no in-kernel mask.
    if n % granule != 0:
        # TODO(synk): this materializes one padded copy in HBM for ragged n; a
        # manual-DMA (memory_space=pl.ANY) variant could stream the unpadded array.
        pad = granule - n % granule
        pad_val = float(jnp.finfo(x.dtype).max)
        x = jnp.pad(x, (0, pad), constant_values=pad_val)

    x2 = x.reshape(-1, LANE)             # contiguous view; no copy when no pad
    rows = x2.shape[0]                   # multiple of `sub`

    max_tile_m = _pick_max_tile_m()
    tile_m = min(max_tile_m, rows)       # rows & max_tile_m are multiples of sub

    # Inner chunk size: largest candidate <= 512 rows that divides tile_m and
    # respects the dtype's sublane packing; bounds live temporaries to ~256 KiB.
    chunk = tile_m
    for c in (512, 256, 128, 64, 32, 16, 8):
        if c % sub == 0 and tile_m % c == 0:
            chunk = c
            break

    total_blocks = pl.cdiv(rows, tile_m)
    n_cores = min(_pick_num_cores(), total_blocks)
    blocks_per_core = pl.cdiv(total_blocks, n_cores)
    grid = (n_cores, blocks_per_core)

    def x_index_map(c, j):
        b = c * blocks_per_core + j
        # Clamp out-of-range duplicate blocks onto the last valid block; their
        # contribution is skipped in-kernel (rows_valid <= 0).
        return (jnp.minimum(b, total_blocks - 1), 0)

    kernel = functools.partial(
        _softplus_partial_sum_kernel,
        rows=rows, tile_m=tile_m, chunk=chunk, blocks_per_core=blocks_per_core)

    partials = pl.pallas_call(
        kernel,
        out_shape=jax.ShapeDtypeStruct((n_cores * SUB, LANE), jnp.float32),
        grid_spec=pltpu.PrefetchScalarGridSpec(
            num_scalar_prefetch=0,
            grid=grid,
            in_specs=[pl.BlockSpec((tile_m, LANE), x_index_map)],
            out_specs=pl.BlockSpec((SUB, LANE), lambda c, j: (c, 0)),
        ),
        compiler_params=pltpu.CompilerParams(
            dimension_semantics=("parallel", "arbitrary")),
    )(x2)

    gen_loss = jnp.sum(partials) / jnp.float32(n)
    return gen_loss, {"gen_loss": lax.stop_gradient(gen_loss)}


if __name__ == "__main__":
    key = jax.random.PRNGKey(0)
    # discriminator fake prediction, NCHW (e.g. patch-GAN logits)
    discr_fake_pred = jax.random.normal(key, (2, 4, 16, 16), dtype=jnp.float32)

    gen_loss, aux = generator_loss(discr_fake_pred)
    gen_loss = jax.block_until_ready(gen_loss)
    aux_loss = jax.block_until_ready(aux["gen_loss"])

    ref = jnp.mean(jax.nn.softplus(-discr_fake_pred))
    assert jnp.allclose(gen_loss, ref, atol=1e-5, rtol=1e-5), (gen_loss, ref)
    assert jnp.allclose(aux_loss, ref, atol=1e-5, rtol=1e-5)

    # Ragged, bf16 case: exercises the max-finite padding path and in-kernel cast.
    x2 = jax.random.normal(jax.random.PRNGKey(1), (3, 5, 7, 11), dtype=jnp.bfloat16)
    loss2, _ = generator_loss(x2)
    loss2 = jax.block_until_ready(loss2)
    ref2 = jnp.mean(jax.nn.softplus(-x2.astype(jnp.float32)))
    assert jnp.allclose(loss2, ref2, atol=1e-5, rtol=1e-5), (loss2, ref2)

    print("KERNEL_OK")
</pallas_src>

<mosaic_0001>
module attributes {stable_mosaic.version = 11 : i64} {
  func.func @_softplus_partial_sum_kernel(%arg0: i32, %arg1: i32, %arg2: memref<16x128xf32, #tpu.memory_space<vmem>>, %arg3: memref<8x128xf32, #tpu.memory_space<vmem>>) attributes {dimension_semantics = [#tpu.dimension_semantics<parallel>, #tpu.dimension_semantics<arbitrary>], iteration_bounds = array<i64: 1, 1>, scalar_prefetch = 0 : i64, scratch_operands = 0 : i64, tpu.core_type = #tpu.core_type<tc>, window_params = [{transform_indices = @transform_0, window_bounds = array<i64: 16, 128>}, {transform_indices = @transform_1, window_bounds = array<i64: 8, 128>}]} {
    %c0_i32 = arith.constant 0 : i32
    %0 = arith.cmpi eq, %arg1, %c0_i32 : i32
    %1 = arith.extui %0 : i1 to i32
    %c0_i32_0 = arith.constant 0 : i32
    %2 = arith.cmpi ne, %1, %c0_i32_0 : i32
    scf.if %2 {
      %cst = arith.constant 0.000000e+00 : f32
      %12 = vector.broadcast %cst : f32 to vector<8x128xf32>
      %c0 = arith.constant 0 : index
      %c0_7 = arith.constant 0 : index
      %13 = vector.load %arg3[%c0, %c0_7] : memref<8x128xf32, #tpu.memory_space<vmem>>, vector<8x128xf32>
      tpu.vector_store %arg3[%c0, %c0_7], %12 {strides = array<i32>} : memref<8x128xf32, #tpu.memory_space<vmem>>, vector<8x128xf32>,
    } else {
    }
    %c1_i32 = arith.constant 1 : i32
    %3 = arith.muli %arg0, %c1_i32 : i32
    %4 = arith.addi %3, %arg1 : i32
    %c16_i32 = arith.constant 16 : i32
    %5 = arith.muli %4, %c16_i32 : i32
    %c16_i32_1 = arith.constant 16 : i32
    %6 = arith.subi %c16_i32_1, %5 : i32
    %c0_i32_2 = arith.constant 0 : i32
    %c16_i32_3 = arith.constant 16 : i32
    %7 = arith.muli %c0_i32_2, %c16_i32_3 : i32
    %8 = arith.subi %6, %7 : i32
    %c0_i32_4 = arith.constant 0 : i32
    %9 = arith.cmpi sgt, %8, %c0_i32_4 : i32
    %10 = arith.extui %9 : i1 to i32
    %c0_i32_5 = arith.constant 0 : i32
    %11 = arith.cmpi ne, %10, %c0_i32_5 : i32
    scf.if %11 {
      %c16_i32_7 = arith.constant 16 : i32
      %12 = arith.muli %c0_i32_2, %c16_i32_7 : i32
      %13 = tpu.assume_multiple %12, 16 : i32
      %14 = arith.index_cast %13 : i32 to index
      %c0 = arith.constant 0 : index
      %15 = vector.load %arg2[%14, %c0] : memref<16x128xf32, #tpu.memory_space<vmem>>, vector<16x128xf32>
      %cst = arith.constant 0.000000e+00 : f32
      %16 = vector.broadcast %cst : f32 to vector<16x128xf32>
      %17 = arith.subf %16, %15 : vector<16x128xf32>
      %cst_8 = arith.constant 0.000000e+00 : f32
      %18 = vector.broadcast %cst_8 : f32 to vector<16x128xf32>
      %19 = arith.maximumf %17, %18 : vector<16x128xf32>
      %20 = math.absf %17 : vector<16x128xf32>
      %cst_9 = arith.constant 0.000000e+00 : f32
      %21 = vector.broadcast %cst_9 : f32 to vector<16x128xf32>
      %22 = arith.subf %21, %20 : vector<16x128xf32>
      %23 = math.exp %22 : vector<16x128xf32>
      %24 = math.log1p %23 : vector<16x128xf32>
      %25 = arith.addf %19, %24 : vector<16x128xf32>
      %c16_i32_10 = arith.constant 16 : i32
      %26 = arith.cmpi sge, %8, %c16_i32_10 : i32
      %27 = arith.extui %26 : i1 to i32
      %c0_i32_11 = arith.constant 0 : i32
      %28 = arith.cmpi ne, %27, %c0_i32_11 : i32
      scf.if %28 {
        %c0_14 = arith.constant 0 : index
        %c0_15 = arith.constant 0 : index
        %32 = vector.load %arg3[%c0_14, %c0_15] : memref<8x128xf32, #tpu.memory_space<vmem>>, vector<8x128xf32>
        %33 = vector.shape_cast %25 : vector<16x128xf32> to vector<2x8x128xf32>
        %cst_16 = arith.constant dense<0.000000e+00> : vector<8x128xf32>
        %34 = vector.multi_reduction <add>, %33, %cst_16 [0] : vector<2x8x128xf32> to vector<8x128xf32>
        %35 = arith.addf %32, %34 : vector<8x128xf32>
        %c0_17 = arith.constant 0 : index
        %c0_18 = arith.constant 0 : index
        %36 = vector.load %arg3[%c0_17, %c0_18] : memref<8x128xf32, #tpu.memory_space<vmem>>, vector<8x128xf32>
        tpu.vector_store %arg3[%c0_17, %c0_18], %35 {strides = array<i32>} : memref<8x128xf32, #tpu.memory_space<vmem>>, vector<8x128xf32>,
      } else {
      }
      %c16_i32_12 = arith.constant 16 : i32
      %29 = arith.cmpi slt, %8, %c16_i32_12 : i32
      %30 = arith.extui %29 : i1 to i32
      %c0_i32_13 = arith.constant 0 : i32
      %31 = arith.cmpi ne, %30, %c0_i32_13 : i32
      scf.if %31 {
        %32 = tpu.iota {dimensions = array<i32: 0>} : vector<16x128xi32>
        %33 = vector.broadcast %8 : i32 to vector<16x128xi32>
        %34 = arith.cmpi slt, %32, %33 : vector<16x128xi32>
        %cst_14 = arith.constant 0.000000e+00 : f32
        %35 = vector.broadcast %cst_14 : f32 to vector<16x128xf32>
        %36 = arith.select %34, %25, %35 : vector<16x128xi1>, vector<16x128xf32>
        %c0_15 = arith.constant 0 : index
        %c0_16 = arith.constant 0 : index
        %37 = vector.load %arg3[%c0_15, %c0_16] : memref<8x128xf32, #tpu.memory_space<vmem>>, vector<8x128xf32>
        %38 = vector.shape_cast %36 : vector<16x128xf32> to vector<2x8x128xf32>
        %cst_17 = arith.constant dense<0.000000e+00> : vector<8x128xf32>
        %39 = vector.multi_reduction <add>, %38, %cst_17 [0] : vector<2x8x128xf32> to vector<8x128xf32>
        %40 = arith.addf %37, %39 : vector<8x128xf32>
        %c0_18 = arith.constant 0 : index
        %c0_19 = arith.constant 0 : index
        %41 = vector.load %arg3[%c0_18, %c0_19] : memref<8x128xf32, #tpu.memory_space<vmem>>, vector<8x128xf32>
        tpu.vector_store %arg3[%c0_18, %c0_19], %40 {strides = array<i32>} : memref<8x128xf32, #tpu.memory_space<vmem>>, vector<8x128xf32>,
      } else {
      }
    } else {
    }
    %c1_i32_6 = arith.constant 1 : i32
    return
  }
  func.func @transform_0(%arg0: i32, %arg1: i32) -> (i32, i32) {
    %c1_i32 = arith.constant 1 : i32
    %0 = arith.muli %arg0, %c1_i32 : i32
    %1 = arith.addi %0, %arg1 : i32
    %c0_i32 = arith.constant 0 : i32
    %2 = arith.minsi %1, %c0_i32 : i32
    %c0_i32_0 = arith.constant 0 : i32
    %c0_i32_1 = arith.constant 0 : i32
    return %2, %c0_i32_0 : i32, i32
  }
  func.func @transform_1(%arg0: i32, %arg1: i32) -> (i32, i32) {
    %c0_i32 = arith.constant 0 : i32
    %c0_i32_0 = arith.constant 0 : i32
    return %arg0, %c0_i32 : i32, i32
  }
}

</mosaic_0001>

<llo_original>
// kernel: generator_loss.1
$region0: #{generator_loss.1}
  #allocation0 [shape = 'u32[]', space=smem, size = 0x4, offset = 0x4, fixed_abs, tag = 'smem constant byte address 0x4 - core index']
  #allocation1 [shape = 'u32[144,128]{1,0:T(1,128)}', space=vmem, size = 0x12000, scoped, tag = 'internal scratch']
  %s0 = inlined_call_operand.vmem [shape: f32[16,128], index: 0, kind: input, shape index: {}]
  %s1 = inlined_call_operand.vmem [shape: f32[8,128], index: 1, kind: output, shape index: {}]
  %s2 = sld [smem:[#allocation0]]
  $region30: #{generator_loss.1} parent=0
    _
  %s4 = ssub.s32 1, %s2
  %s5 = scalar_select 0, %s4, %s2
  // Predicated region
  $region2: #{generator_loss.1} parent=0 // pred_check
    _
  $region3: #{generator_loss.1} parent=0 // pred_check_branch
    %7 = sbr.rel (0) target = $region5
  $region4: #{generator_loss.1} parent=0 // pred_region
    %s8 = sadd.s32 0, 0
    %p9 = scmp.lt.s32.totalorder %s8, 0
    %s10 = scalar_select %p9, %s8, 0
    %s11 = smul.u32 2, %s10
    %p12 = scmp.lt.s32.totalorder %s11, 1
    %s13 = scalar_select %p12, %s11, 1
    %s14 = smul.addr %s13, 8
    %s15 = scalar_lea.vmem %s0, %s14
    %s16 = sadd.s32 0, 0
    %p17 = scmp.lt.s32.totalorder %s16, 0
    %s18 = scalar_select %p17, %s16, 0
    %s19 = smul.u32 2, %s18
  $region5: #{generator_loss.1} parent=0 // pred_fallthru
    _
  %s20 = sadd.s32 0, 0
  %p21 = scmp.lt.s32.totalorder %s20, 0
  %s22 = scalar_select %p21, %s20, 0
  %s23 = smul.u32 2, %s22
  %p24 = scmp.lt.s32.totalorder %s23, 1
  %s25 = scalar_select %p24, %s23, 1
  %s26 = smul.addr %s25, 8
  %s27 = scalar_lea.vmem %s0, %s26
  %s28 = sadd.s32 0, 0
  %p29 = scmp.lt.s32.totalorder %s28, 0
  %s30 = scalar_select %p29, %s28, 0
  %s31 = smul.u32 2, %s30
  %p32 = scmp.lt.s32.totalorder %s31, 1
  %s33 = scalar_select %p32, %s31, 1
  %s34 = smul.addr %s33, 8
  %s35 = scalar_lea.vmem %s0, %s34
  %s36 = sadd.s32 0, 0
  %p37 = scmp.lt.s32.totalorder %s36, 0
  %s38 = scalar_select %p37, %s36, 0
  %s39 = smul.u32 2, %s38
  %p40 = scmp.eq.s32.totalorder 0, 0
  // Predicated region
  $region6: #{generator_loss.1} parent=0 // pred_check
    %p41 = pneg %p40
  $region7: #{generator_loss.1} parent=0 // pred_check_branch
    %43 = sbr.rel (%p41) target = $region9
  $region8: #{generator_loss.1} parent=0 // pred_region
    %44 = vst [vmem:[%s1] sm:$0xff] 0.0
  $region9: #{generator_loss.1} parent=0 // pred_fallthru
    _
  %s45 = sadd.s32 0, 0
  %s46 = smul.u32 %s45, 16
  %s47 = ssub.s32 16, %s46
  %p48 = scmp.gt.s32.totalorder %s47, 0
  // Predicated region
  $region10: #{generator_loss.1} parent=0 // pred_check
    %p49 = pneg %p48
  $region11: #{generator_loss.1} parent=0 // pred_check_branch
    %51 = sbr.rel (%p49) target = $region13
  $region12: #{generator_loss.1} parent=0 // pred_region
    %v52 = vld [vmem:[%s35] sm:$0xff]
    %v53 = vld [vmem:[%s35 + $0x8] sm:$0xff]
    %v54 = vsub.f32 0.0, %v52
    %v55 = vsub.f32 0.0, %v53
    %v56 = vmax.f32 %v54, 0.0
    %v57 = vmax.f32 %v55, 0.0
    %v58 = vand.u32 2147483647, %v54
    %v59 = vand.u32 2147483647, %v55
    %v60 = vsub.f32 0.0, %v58
    %v61 = vsub.f32 0.0, %v59
    %v62 = vmul.f32 %v60, 1.442695
    %v63 = vpow.pop %v62
    %v64 = vmul.f32 %v61, 1.442695
    %v65 = vpow.pop %v64
    %v66 = vadd.f32 %v63, 1.0
    %v67 = vlog2.pop %v66
    %v68 = vmul.f32 %v67, 0.6931472
    %v69 = vmul.f32 -0.5, %v63
    %v70 = vadd.f32 %v69, 1.0
    %v71 = vmul.f32 %v70, %v63
    %v72 = vand.u32 2147483647, %v63
    %vm73 = vcmp.lt.f32.partialorder %v72, 0.0004427343
    %v74 = vsel %vm73, %v71, %v68
    %v75 = vadd.f32 %v65, 1.0
    %v76 = vlog2.pop %v75
    %v77 = vmul.f32 %v76, 0.6931472
    %v78 = vmul.f32 -0.5, %v65
    %v79 = vadd.f32 %v78, 1.0
    %v80 = vmul.f32 %v79, %v65
    %v81 = vand.u32 2147483647, %v65
    %vm82 = vcmp.lt.f32.partialorder %v81, 0.0004427343
    %v83 = vsel %vm82, %v80, %v77
    %v84 = vadd.f32 %v56, %v74
    %v85 = vadd.f32 %v57, %v83
    %p86 = scmp.ge.s32.totalorder %s47, 16
    // Predicated region
    $region14: #{generator_loss.1} parent=12 // pred_check
      %p87 = pneg %p86
    $region15: #{generator_loss.1} parent=12 // pred_check_branch
      %89 = sbr.rel (%p87) target = $region17
    $region16: #{generator_loss.1} parent=12 // pred_region
      %v90 = vld [vmem:[%s1] sm:$0xff]
      %v91 = vadd.f32 %v84, %v85
      %v92 = vadd.f32 %v90, %v91
      %93 = vst [vmem:[%s1] sm:$0xff] %v92
    $region17: #{generator_loss.1} parent=12 // pred_fallthru
      _
    %p94 = scmp.lt.s32.totalorder %s47, 16
    // Predicated region
    $region18: #{generator_loss.1} parent=12 // pred_check
      %p95 = pneg %p94
    $region19: #{generator_loss.1} parent=12 // pred_check_branch
      %97 = sbr.rel (%p95) target = $region21
    $region20: #{generator_loss.1} parent=12 // pred_region
      %v98 = vlaneseq
      %v99 = vshrl.u32 %v98, 7
      %v100 = vadd.s32 %v99, 8
      %v101 = vstv %s47
      %vm102 = vcmp.lt.s32.totalorder %v99, %v101
      %vm103 = vcmp.lt.s32.totalorder %v100, %v101
      %v104 = vsel %vm102, %v84, 0.0
      %v105 = vsel %vm103, %v85, 0.0
      %v106 = vld [vmem:[%s1] sm:$0xff]
      %v107 = vadd.f32 %v104, %v105
      %v108 = vadd.f32 %v106, %v107
      %109 = vst [vmem:[%s1] sm:$0xff] %v108
    $region21: #{generator_loss.1} parent=12 // pred_fallthru
      _
  $region13: #{generator_loss.1} parent=0 // pred_fallthru
    _
  // Predicated region
  $region22: #{generator_loss.1} parent=0 // pred_check
    _
  $region23: #{generator_loss.1} parent=0 // pred_check_branch
    %111 = sbr.rel (0) target = $region25
  $region24: #{generator_loss.1} parent=0 // pred_region
    _
  $region25: #{generator_loss.1} parent=0 // pred_fallthru
    _
  // Predicated region
  $region26: #{generator_loss.1} parent=0 // pred_check
    _
  $region27: #{generator_loss.1} parent=0 // pred_check_branch
    %113 = sbr.rel (0) target = $region29
  $region28: #{generator_loss.1} parent=0 // pred_region
    _
  $region29: #{generator_loss.1} parent=0 // pred_fallthru
    _

</llo_original>
